<compile_context>
chip_gen: v7x
topology: tpu7x:2x2x1
jax: 0.10.0
libtpu: 0.0.40
codegen_flags: <defaults>
</compile_context>

<pallas_src>
import jax
import jax.numpy as jnp
from jax.experimental import pallas as pl
from jax.experimental.pallas import tpu as pltpu


def apply_noise_kernel(x_ref, noise_ref, w_ref, o_ref):
    # x_ref:     (1, C, TS)  VMEM tile
    # noise_ref: (1, 1, TS)  noise tile (broadcast over channels / sublanes)
    # w_ref:     (1, C, 1)   per-channel scale (broadcast over lanes), resident
    # o_ref:     (1, C, TS)
    o_ref[...] = x_ref[...] + w_ref[...] * noise_ref[...]


def _choose_tile(S, C, itemsize, vmem_budget_bytes=8 * 1024 * 1024):
    """Pick a lane-dense spatial tile TS (multiple of 128) and padded extent S_pad.

    Budget covers double-buffered x + out + noise tiles and stays comfortably
    under the default scoped-VMEM limits of v5e (16 MiB), v6e (32 MiB) and
    v7x (32 MiB of 64 MiB physical).
    """
    s_pad128 = ((S + 127) // 128) * 128
    per_lane_col = 2 * (2 * C + 1) * itemsize          # 2x double-buffering
    ts_max = max(128, (vmem_budget_bytes // per_lane_col) // 128 * 128)
    ts = min(ts_max, s_pad128)
    s_pad = ((S + ts - 1) // ts) * ts                  # guarantee TS | S_pad
    return ts, s_pad


def apply_noise(x, noise, weight, *, noise_key=None):
    """x: (N, C, D, H, W); noise: (N, 1, D, H, W) or None; weight: (C,)."""
    N, C, D, H, W = x.shape
    if noise is None:
        # TODO(synk): PyTorch draws fresh randn each call; a further bandwidth win
        # would be generating the noise in-kernel via pltpu.prng_random_bits.
        if noise_key is None:
            noise_key = jax.random.PRNGKey(1)
        noise = jax.random.normal(noise_key, (N, 1, D, H, W), dtype=x.dtype)

    S = D * H * W
    itemsize = jnp.dtype(x.dtype).itemsize
    TS, S_pad = _choose_tile(S, C, itemsize)

    x2 = x.reshape(N, C, S)
    n2 = noise.astype(x.dtype).reshape(N, 1, S)
    if S_pad != S:
        pad = S_pad - S
        x2 = jnp.pad(x2, ((0, 0), (0, 0), (0, pad)))
        n2 = jnp.pad(n2, ((0, 0), (0, 0), (0, pad)))
    w3 = weight.astype(x.dtype).reshape(1, C, 1)       # channels on sublanes

    grid = (N, S_pad // TS)
    out = pl.pallas_call(
        apply_noise_kernel,
        out_shape=jax.ShapeDtypeStruct((N, C, S_pad), x.dtype),
        grid_spec=pltpu.PrefetchScalarGridSpec(
            num_scalar_prefetch=0,
            grid=grid,
            in_specs=[
                pl.BlockSpec((1, C, TS), lambda n, s: (n, 0, s)),   # x tile
                pl.BlockSpec((1, 1, TS), lambda n, s: (n, 0, s)),   # noise tile
                pl.BlockSpec((1, C, 1), lambda n, s: (0, 0, 0)),    # weight (resident)
            ],
            out_specs=pl.BlockSpec((1, C, TS), lambda n, s: (n, 0, s)),
        ),
        compiler_params=pltpu.CompilerParams(
            dimension_semantics=("parallel", "parallel"),
            vmem_limit_bytes=32 * 1024 * 1024,
        ),
        cost_estimate=pl.CostEstimate(
            flops=2 * N * C * S_pad,
            transcendentals=0,
            bytes_accessed=(2 * N * C * S_pad + N * S_pad + C) * itemsize,
        ),
    )(x2, n2, w3)

    if S_pad != S:
        out = out[:, :, :S]
    return out.reshape(N, C, D, H, W)


def _reference(x, noise, weight):
    N, C = x.shape[0], x.shape[1]
    return x + weight.reshape(1, C, 1, 1, 1) * noise


if __name__ == "__main__":
    key = jax.random.PRNGKey(0)

    # Case 1: lane-friendly spatial extent (S = 4*8*16 = 512).
    kx, kn, key = jax.random.split(key, 3)
    N, C, D, H, W = 2, 4, 4, 8, 16
    x = jax.random.normal(kx, (N, C, D, H, W), dtype=jnp.float32)
    noise = jax.random.normal(kn, (N, 1, D, H, W), dtype=jnp.float32)
    weight = jnp.linspace(-1.0, 1.0, C, dtype=jnp.float32)

    out = jax.block_until_ready(apply_noise(x, noise, weight))
    ref = _reference(x, noise, weight)
    assert out.shape == x.shape and out.dtype == x.dtype
    assert jnp.allclose(out, ref, atol=1e-6, rtol=1e-6)

    # Case 2: ragged spatial extent (S = 3*5*7 = 105) exercising the pad path.
    kx2, kn2, key = jax.random.split(key, 3)
    N2, C2, D2, H2, W2 = 2, 6, 3, 5, 7
    x2 = jax.random.normal(kx2, (N2, C2, D2, H2, W2), dtype=jnp.float32)
    noise2 = jax.random.normal(kn2, (N2, 1, D2, H2, W2), dtype=jnp.float32)
    weight2 = jnp.linspace(0.5, -0.5, C2, dtype=jnp.float32)

    out2 = jax.block_until_ready(apply_noise(x2, noise2, weight2))
    ref2 = _reference(x2, noise2, weight2)
    assert out2.shape == x2.shape and out2.dtype == x2.dtype
    assert jnp.allclose(out2, ref2, atol=1e-6, rtol=1e-6)

    print("KERNEL_OK")
</pallas_src>

<mosaic_0001>
module attributes {stable_mosaic.version = 11 : i64} {
  func.func @apply_noise_kernel(%arg0: i32, %arg1: i32, %arg2: memref<1x4x512xf32, #tpu.memory_space<vmem>>, %arg3: memref<1x1x512xf32, #tpu.memory_space<vmem>>, %arg4: memref<1x4x1xf32, #tpu.memory_space<vmem>>, %arg5: memref<1x4x512xf32, #tpu.memory_space<vmem>>) attributes {dimension_semantics = [#tpu.dimension_semantics<parallel>, #tpu.dimension_semantics<parallel>], iteration_bounds = array<i64: 2, 1>, scalar_prefetch = 0 : i64, scratch_operands = 0 : i64, tpu.core_type = #tpu.core_type<tc>, window_params = [{transform_indices = @transform_0, window_bounds = array<i64: 1, 4, 512>}, {transform_indices = @transform_1, window_bounds = array<i64: 1, 1, 512>}, {pipeline_mode = #tpu.pipeline_mode<synchronous>, transform_indices = @transform_2, window_bounds = array<i64: 1, 4, 1>}, {transform_indices = @transform_3, window_bounds = array<i64: 1, 4, 512>}]} {
    %c0 = arith.constant 0 : index
    %c0_0 = arith.constant 0 : index
    %c0_1 = arith.constant 0 : index
    %0 = vector.load %arg2[%c0, %c0_0, %c0_1] : memref<1x4x512xf32, #tpu.memory_space<vmem>>, vector<1x4x512xf32>
    %c0_2 = arith.constant 0 : index
    %c0_3 = arith.constant 0 : index
    %c0_4 = arith.constant 0 : index
    %1 = vector.load %arg4[%c0_2, %c0_3, %c0_4] : memref<1x4x1xf32, #tpu.memory_space<vmem>>, vector<1x4x1xf32>
    %c0_5 = arith.constant 0 : index
    %c0_6 = arith.constant 0 : index
    %c0_7 = arith.constant 0 : index
    %2 = vector.load %arg3[%c0_5, %c0_6, %c0_7] : memref<1x1x512xf32, #tpu.memory_space<vmem>>, vector<1x1x512xf32>
    %3 = vector.broadcast %1 : vector<1x4x1xf32> to vector<1x4x512xf32>
    %4 = vector.broadcast %2 : vector<1x1x512xf32> to vector<1x4x512xf32>
    %5 = arith.mulf %3, %4 : vector<1x4x512xf32>
    %6 = arith.addf %0, %5 : vector<1x4x512xf32>
    %c0_8 = arith.constant 0 : index
    %c0_9 = arith.constant 0 : index
    %c0_10 = arith.constant 0 : index
    %7 = vector.load %arg5[%c0_8, %c0_9, %c0_10] : memref<1x4x512xf32, #tpu.memory_space<vmem>>, vector<1x4x512xf32>
    tpu.vector_store %arg5[%c0_8, %c0_9, %c0_10], %6 {strides = array<i32>} : memref<1x4x512xf32, #tpu.memory_space<vmem>>, vector<1x4x512xf32>,
    return
  }
  func.func @transform_0(%arg0: i32, %arg1: i32) -> (i32, i32, i32) {
    %c0_i32 = arith.constant 0 : i32
    %c0_i32_0 = arith.constant 0 : i32
    return %arg0, %c0_i32, %arg1 : i32, i32, i32
  }
  func.func @transform_1(%arg0: i32, %arg1: i32) -> (i32, i32, i32) {
    %c0_i32 = arith.constant 0 : i32
    %c0_i32_0 = arith.constant 0 : i32
    return %arg0, %c0_i32, %arg1 : i32, i32, i32
  }
  func.func @transform_2(%arg0: i32, %arg1: i32) -> (i32, i32, i32) {
    %c0_i32 = arith.constant 0 : i32
    %c0_i32_0 = arith.constant 0 : i32
    %c0_i32_1 = arith.constant 0 : i32
    %c0_i32_2 = arith.constant 0 : i32
    return %c0_i32, %c0_i32_0, %c0_i32_1 : i32, i32, i32
  }
  func.func @transform_3(%arg0: i32, %arg1: i32) -> (i32, i32, i32) {
    %c0_i32 = arith.constant 0 : i32
    %c0_i32_0 = arith.constant 0 : i32
    return %arg0, %c0_i32, %arg1 : i32, i32, i32
  }
}

</mosaic_0001>

<llo_original>
// kernel: tpu_custom_call.1
$region0: #{tpu_custom_call.1}
  #allocation0 [shape = 'u32[]', space=smem, size = 0x4, offset = 0x4, fixed_abs, tag = 'smem constant byte address 0x4 - core index']
  #allocation1 [shape = 'u32[144,128]{1,0:T(1,128)}', space=vmem, size = 0x12000, scoped, tag = 'internal scratch']
  %s0 = inlined_call_operand.hbm [shape: f32[2,4,512], index: 0, kind: input, shape index: {}]
  %s1 = inlined_call_operand.vmem [shape: f32[2,1,512], index: 1, kind: input, shape index: {}]
  %s2 = inlined_call_operand.vmem [shape: f32[1,4,1], index: 2, kind: input, shape index: {}]
  %s3 = inlined_call_operand.hbm [shape: f32[2,4,512], index: 3, kind: output, shape index: {}]
  %s4 = sld [smem:[#allocation0]]
  $region49: #{tpu_custom_call.1} parent=0
    _
  %s6 = ssub.s32 1, %s4
  %s7 = scalar_select 0, %s6, %s4
  $region1: #{tpu_custom_call.1} parent=0
    #allocation2 [shape = 'u8[16384]{0}', space=vmem, size = 0x4000, scoped, tag = 'input window, operand 0']
    #allocation3 [shape = 's32[2]{0}', space=sflag, size = 0x8, scoped, tag = 'scoped memory for tpu_custom_call.1']
    #allocation4 [shape = 's32[2]{0}', space=sflag, size = 0x8, scoped, tag = 'scoped memory for tpu_custom_call.1']
    #allocation5 [shape = 'u8[16384]{0}', space=vmem, size = 0x4000, scoped, tag = 'output window, operand 0']
    %8 = vsyncpa [#allocation3], 0
    %s9 = scalar_lea.sflag [#allocation3], 1
    %10 = vsyncpa %s9, 0
    %11 = vsyncpa [#allocation4], 0
    %s12 = scalar_lea.sflag [#allocation4], 1
    %13 = vsyncpa %s12, 0
    loop: start=0, step=1, limit=4
    $region2: #{tpu_custom_call.1} parent=1 // loop_pre_header
      _
    $region3: #{tpu_custom_call.1} parent=1 // loop_header
      %s15 = sphi 0, %s19
      %p16 = scmp.ge.s32.totalorder %s15, 4
      %s22 = sphi 0, %s34
      %s23 = sphi 0, %s30
      %s24 = sphi 0, %s22
      %s25 = sphi 0, %s23
      %s26 = sphi 0, %s24
      %s27 = sphi 0, %s25
      %s39 = sphi 0, %s41
      %s42 = sphi 0, %s39
      %s43 = sphi 0, %s42
      %s59 = sphi 0, %s43
      %s67 = sphi 0, %s69
      %s70 = sphi 0, %s67
      %s71 = sphi 0, %s70
      %s87 = sphi 0, %s71
      %s91 = sphi 0, %s91
      %s93 = sphi 0, %s91
      %s94 = sphi 0, %s93
      %s108 = sphi 0, %s94
      %s116 = sphi 0, %s118
      %s119 = sphi 0, %s116
      %s120 = sphi 0, %s119
      %s136 = sphi 0, %s120
    $region4: #{tpu_custom_call.1} parent=1 // loop_header_branch
      %18 = sbr.rel (%p16) target = $region8
    $region5: #{tpu_custom_call.1} parent=1 // loop_body
      %s20 = ssub.s32 %s15, 1
      %s21 = ssub.s32 %s15, 2
      %s28 = sadd.s32 1, %s23
      %p29 = scmp.ge.s32.totalorder %s28, 1
      %s30 = scalar_select %p29, 0, %s28
      %s31 = sadd.s32 1, %s22
      %s32 = scalar_select %p29, %s31, %s22
      %p33 = scmp.ge.s32.totalorder %s32, 2
      %s34 = scalar_select %p33, 0, %s32
      %s35 = ssub.s32 %s22, %s34
      %s36 = ssub.s32 %s23, %s30
      %s37 = sor.u32 %s35, %s36
      %p38 = scmp.eq.s32.totalorder %s37, 0
      %s40 = sadd.s32 %s39, 1
      %s41 = scalar_select %p38, %s39, %s40
      %p44 = pneg %p38
      %p45 = scmp.eq.s32.totalorder %s15, 1
      %p46 = por %p44, %p45
      %p47 = scmp.ne.s32.totalorder %s39, %s42
      %p48 = scmp.eq.s32.totalorder %s15, 0
      %p49 = por %p47, %p48
      %p50 = scmp.ne.s32.totalorder %s39, %s42
      %p51 = scmp.eq.s32.totalorder %s20, 1
      %p52 = por %p50, %p51
      %p53 = scmp.ne.s32.totalorder %s42, %s43
      %p54 = scmp.eq.s32.totalorder %s20, 0
      %p55 = por %p53, %p54
      %p56 = scmp.ne.s32.totalorder %s42, %s43
      %p57 = scmp.eq.s32.totalorder %s21, 1
      %p58 = por %p56, %p57
      %p60 = scmp.ne.s32.totalorder %s43, %s59
      %p61 = scmp.eq.s32.totalorder %s21, 0
      %p62 = por %p60, %p61
      %s63 = ssub.s32 %s22, %s34
      %s64 = ssub.s32 %s23, %s30
      %s65 = sor.u32 %s63, %s64
      %p66 = scmp.eq.s32.totalorder %s65, 0
      %s68 = sadd.s32 %s67, 1
      %s69 = scalar_select %p66, %s67, %s68
      %p72 = pneg %p66
      %p73 = scmp.eq.s32.totalorder %s15, 1
      %p74 = por %p72, %p73
      %p75 = scmp.ne.s32.totalorder %s67, %s70
      %p76 = scmp.eq.s32.totalorder %s15, 0
      %p77 = por %p75, %p76
      %p78 = scmp.ne.s32.totalorder %s67, %s70
      %p79 = scmp.eq.s32.totalorder %s20, 1
      %p80 = por %p78, %p79
      %p81 = scmp.ne.s32.totalorder %s70, %s71
      %p82 = scmp.eq.s32.totalorder %s20, 0
      %p83 = por %p81, %p82
      %p84 = scmp.ne.s32.totalorder %s70, %s71
      %p85 = scmp.eq.s32.totalorder %s21, 1
      %p86 = por %p84, %p85
      %p88 = scmp.ne.s32.totalorder %s71, %s87
      %p89 = scmp.eq.s32.totalorder %s21, 0
      %p90 = por %p88, %p89
      %s92 = sadd.s32 %s91, 1
      %p95 = scmp.eq.s32.totalorder %s15, 1
      %p96 = scmp.ne.s32.totalorder %s91, %s93
      %p97 = scmp.eq.s32.totalorder %s15, 0
      %p98 = por %p96, %p97
      %p99 = scmp.ne.s32.totalorder %s91, %s93
      %p100 = scmp.eq.s32.totalorder %s20, 1
      %p101 = por %p99, %p100
      %p102 = scmp.ne.s32.totalorder %s93, %s94
      %p103 = scmp.eq.s32.totalorder %s20, 0
      %p104 = por %p102, %p103
      %p105 = scmp.ne.s32.totalorder %s93, %s94
      %p106 = scmp.eq.s32.totalorder %s21, 1
      %p107 = por %p105, %p106
      %p109 = scmp.ne.s32.totalorder %s94, %s108
      %p110 = scmp.eq.s32.totalorder %s21, 0
      %p111 = por %p109, %p110
      %s112 = ssub.s32 %s22, %s34
      %s113 = ssub.s32 %s23, %s30
      %s114 = sor.u32 %s112, %s113
      %p115 = scmp.eq.s32.totalorder %s114, 0
      %s117 = sadd.s32 %s116, 1
      %s118 = scalar_select %p115, %s116, %s117
      %p121 = pneg %p115
      %p122 = scmp.eq.s32.totalorder %s15, 1
      %p123 = por %p121, %p122
      %p124 = scmp.ne.s32.totalorder %s116, %s119
      %p125 = scmp.eq.s32.totalorder %s15, 0
      %p126 = por %p124, %p125
      %p127 = scmp.ne.s32.totalorder %s116, %s119
      %p128 = scmp.eq.s32.totalorder %s20, 1
      %p129 = por %p127, %p128
      %p130 = scmp.ne.s32.totalorder %s119, %s120
      %p131 = scmp.eq.s32.totalorder %s20, 0
      %p132 = por %p130, %p131
      %p133 = scmp.ne.s32.totalorder %s119, %s120
      %p134 = scmp.eq.s32.totalorder %s21, 1
      %p135 = por %p133, %p134
      %p137 = scmp.ne.s32.totalorder %s120, %s136
      %p138 = scmp.eq.s32.totalorder %s21, 0
      %p139 = por %p137, %p138
      %p140 = scmp.le.s32.totalorder 1, %s15
      %p141 = scmp.lt.s32.totalorder %s15, 3
      %p142 = pnand %p140, %p141
      %p143 = pneg %p142
      // Predicated region
      $region9: #{tpu_custom_call.1} parent=5 // pred_check
        _
      $region10: #{tpu_custom_call.1} parent=5 // pred_check_branch
        %145 = sbr.rel (%p142) target = $region12
      $region11: #{tpu_custom_call.1} parent=5 // pred_region
        %s146 = ssub.s32 %s15, 1
        // Predicated region
        $region13: #{tpu_custom_call.1} parent=11 // pred_check
          %p147 = pneg %p104
        $region14: #{tpu_custom_call.1} parent=11 // pred_check_branch
          %149 = sbr.rel (%p147) target = $region16
        $region15: #{tpu_custom_call.1} parent=11 // pred_region
          _
        $region16: #{tpu_custom_call.1} parent=11 // pred_fallthru
          _
      $region12: #{tpu_custom_call.1} parent=5 // pred_fallthru
        _
      %p150 = scmp.lt.s32.totalorder %s15, 2
      // Predicated region
      $region17: #{tpu_custom_call.1} parent=5 // pred_check
        %p151 = pneg %p150
      $region18: #{tpu_custom_call.1} parent=5 // pred_check_branch
        %153 = sbr.rel (%p151) target = $region20
      $region19: #{tpu_custom_call.1} parent=5 // pred_region
        // Predicated region
        $region21: #{tpu_custom_call.1} parent=19 // pred_check
          %p154 = pneg %p49
        $region22: #{tpu_custom_call.1} parent=19 // pred_check_branch
          %156 = sbr.rel (%p154) target = $region24
        $region23: #{tpu_custom_call.1} parent=19 // pred_region
          %s157 = sand.u32 %s39, 1
          %s158 = scalar_lea.sflag [#allocation3], %s157
          %s159 = sand.u32 %s39, 1
          %s160 = smul.addr %s159, 16
          %s161 = scalar_lea.vmem [#allocation2], %s160
          %s162 = smul.u32 4, %s23
          %s164 = ssub.s32 256, 256
          %165 = vsyncadd %s158, %s164
          %s166 = smul.addr %s22, 4
          %s167 = sadd.s32 %s162, %s166
          %s168 = smul.addr %s167, 64
          %s169 = scalar_lea.hbm %s0, %s168
          %s171 = sshll.u32 %s161, 4
          %s172 = int_to_ptr.vmem [resolvable:$true] %s171
          %174 = dma.hbm_to_vmem [thread:$0]  %s169, 256, %s172, %s158
        $region24: #{tpu_custom_call.1} parent=19 // pred_fallthru
          _
        // Predicated region
        $region25: #{tpu_custom_call.1} parent=19 // pred_check
          %p175 = pneg %p77
        $region26: #{tpu_custom_call.1} parent=19 // pred_check_branch
          %177 = sbr.rel (%p175) target = $region28
        $region27: #{tpu_custom_call.1} parent=19 // pred_region
          %s178 = smul.u32 4, %s23
          %p179 = scmp.lt.s32.totalorder %s22, 1
          %s180 = scalar_select %p179, %s22, 1
          %p181 = scmp.lt.s32.totalorder %s178, 3
          %s182 = scalar_select %p181, %s178, 3
          %s183 = smul.addr %s180, 4
          %s184 = sadd.s32 %s182, %s183
          %s185 = scalar_lea.vmem %s1, %s184
          %s186 = smul.u32 4, %s23
        $region28: #{tpu_custom_call.1} parent=19 // pred_fallthru
          _
      $region20: #{tpu_custom_call.1} parent=5 // pred_fallthru
        _
      %p187 = scmp.le.s32.totalorder 1, %s15
      %p188 = scmp.lt.s32.totalorder %s15, 3
      %p189 = pnand %p187, %p188
      %p190 = pneg %p189
      // Predicated region
      $region29: #{tpu_custom_call.1} parent=5 // pred_check
        _
      $region30: #{tpu_custom_call.1} parent=5 // pred_check_branch
        %192 = sbr.rel (%p189) target = $region32
      $region31: #{tpu_custom_call.1} parent=5 // pred_region
        %s193 = ssub.s32 %s15, 1
        %s194 = sand.u32 %s42, 1
        %s195 = scalar_lea.sflag [#allocation3], %s194
        %s196 = sand.u32 %s42, 1
        %s197 = smul.addr %s196, 16
        %s198 = scalar_lea.vmem [#allocation2], %s197
        // Predicated region
        $region33: #{tpu_custom_call.1} parent=31 // pred_check
          %p199 = pneg %p55
        $region34: #{tpu_custom_call.1} parent=31 // pred_check_branch
          %201 = sbr.rel (%p199) target = $region36
        $region35: #{tpu_custom_call.1} parent=31 // pred_region
          %202 = dma.done %s195, 256
        $region36: #{tpu_custom_call.1} parent=31 // pred_fallthru
          _
        %s203 = sand.u32 %s42, 1
        %s204 = scalar_lea.sflag [#allocation3], %s203
        %s205 = sand.u32 %s42, 1
        %s206 = smul.addr %s205, 16
        %s207 = scalar_lea.vmem [#allocation2], %s206
        %p208 = pneg %p55
        %p209 = pneg %p52
        %s210 = smul.u32 4, %s25
        %p211 = scmp.lt.s32.totalorder %s24, 1
        %s212 = scalar_select %p211, %s24, 1
        %p213 = scmp.lt.s32.totalorder %s210, 3
        %s214 = scalar_select %p213, %s210, 3
        %s215 = smul.addr %s212, 4
        %s216 = sadd.s32 %s214, %s215
        %s217 = scalar_lea.vmem %s1, %s216
        %p218 = pneg %p83
        %p219 = pneg %p80
        %p220 = pneg %p104
        %p221 = pneg %p101
        %p222 = pneg %p132
        %p223 = pneg %p129
        %s224 = sand.u32 %s119, 1
        %s225 = scalar_lea.sflag [#allocation4], %s224
        %s226 = sand.u32 %s119, 1
        %s227 = smul.addr %s226, 16
        %s228 = scalar_lea.vmem [#allocation5], %s227
        %s229 = smul.u32 4, %s25
        %s230 = smul.u32 4, %s25
        %p231 = scmp.lt.s32.totalorder %s24, 1
        %s232 = scalar_select %p231, %s24, 1
        %p233 = scmp.lt.s32.totalorder %s230, 3
        %s234 = scalar_select %p233, %s230, 3
        %s235 = smul.addr %s232, 4
        %s236 = sadd.s32 %s234, %s235
        %s237 = scalar_lea.vmem %s1, %s236
        %s238 = smul.u32 4, %s25
        %s239 = smul.u32 4, %s25
        %v240 = vld [vmem:[%s198] sm:$0xff]
        %v241 = vld [vmem:[%s198 + $0x8] sm:$0xff]
        %v242 = vld [vmem:[%s2] sm:$0xf]
        %v243 = vld [vmem:[%s237] sm:$0xf]
        %245 = vset.pattern.permute.xlu0 0
        %246 = vperm.xlu0 %245, %v242
        %v247 = vpop.permute.xlu0 %246
        %v250 = vlaneseq
        %v251 = vshrl.u32 %v250, 7
        %v252 = vsub.s32 0, %v251
        %v253 = vrot.slane %v243, %v252
        %v254 = vlaneseq
        %v255 = vshrl.u32 %v254, 7
        %v256 = vsub.s32 1, %v255
        %v257 = vrot.slane %v243, %v256
        %v258 = vlaneseq
        %v259 = vshrl.u32 %v258, 7
        %v260 = vsub.s32 2, %v259
        %v261 = vrot.slane %v243, %v260
        %v262 = vlaneseq
        %v263 = vshrl.u32 %v262, 7
        %v264 = vsub.s32 3, %v263
        %v265 = vrot.slane %v243, %v264
        %v270 = vmul.f32 %v247, %v253
        %v271 = vmul.f32 %v247, %v257
        %v272 = vmul.f32 %v247, %v261
        %v273 = vmul.f32 %v247, %v265
        %v278 = vcombine.low %v270, %v271
        %v279 = vcombine.low %v272, %v273
        %v282 = vadd.f32 %v240, %v278
        %v283 = vadd.f32 %v241, %v279
        %284 = vst [vmem:[%s228] sm:$0xff] %v282
        %285 = vst [vmem:[%s228 + $0x8] sm:$0xff] %v283
        %s286 = sand.u32 %s119, 1
        %s287 = scalar_lea.sflag [#allocation4], %s286
        %s288 = sand.u32 %s119, 1
        %s289 = smul.addr %s288, 16
        %s290 = scalar_lea.vmem [#allocation5], %s289
        // Predicated region
        $region37: #{tpu_custom_call.1} parent=31 // pred_check
          %p291 = pneg %p129
        $region38: #{tpu_custom_call.1} parent=31 // pred_check_branch
          %293 = sbr.rel (%p291) target = $region40
        $region39: #{tpu_custom_call.1} parent=31 // pred_region
          %s294 = smul.u32 4, %s25
          %s296 = ssub.s32 256, 256
          %297 = vsyncadd %s287, %s296
          %s298 = smul.addr %s24, 4
          %s299 = sadd.s32 %s294, %s298
          %s300 = smul.addr %s299, 64
          %s301 = scalar_lea.hbm %s3, %s300
          %s303 = sshll.u32 %s290, 4
          %s304 = int_to_ptr.vmem [resolvable:$true] %s303
          %306 = dma.vmem_to_hbm [thread:$0]  %s304, 256, %s301, %s287
        $region40: #{tpu_custom_call.1} parent=31 // pred_fallthru
          _
      $region32: #{tpu_custom_call.1} parent=5 // pred_fallthru
        _
      %p307 = scmp.le.s32.totalorder 2, %s15
      // Predicated region
      $region41: #{tpu_custom_call.1} parent=5 // pred_check
        %p308 = pneg %p307
      $region42: #{tpu_custom_call.1} parent=5 // pred_check_branch
        %310 = sbr.rel (%p308) target = $region44
      $region43: #{tpu_custom_call.1} parent=5 // pred_region
        %s311 = ssub.s32 %s15, 2
        // Predicated region
        $region45: #{tpu_custom_call.1} parent=43 // pred_check
          %p312 = pneg %p135
        $region46: #{tpu_custom_call.1} parent=43 // pred_check_branch
          %314 = sbr.rel (%p312) target = $region48
        $region47: #{tpu_custom_call.1} parent=43 // pred_region
          %s315 = sand.u32 %s120, 1
          %s316 = scalar_lea.sflag [#allocation4], %s315
          %s317 = sand.u32 %s120, 1
          %s318 = smul.addr %s317, 16
          %s319 = scalar_lea.vmem [#allocation5], %s318
          %320 = dma.done %s316, 256
        $region48: #{tpu_custom_call.1} parent=43 // pred_fallthru
          _
      $region44: #{tpu_custom_call.1} parent=5 // pred_fallthru
        _
    $region6: #{tpu_custom_call.1} parent=1 // loop_footer
      %s19 = sadd.s32 1, %s15
    $region7: #{tpu_custom_call.1} parent=1 // loop_footer_branch
      %14 = sbr.rel target = $region3
    $region8: #{tpu_custom_call.1} parent=1 // loop_exit
      _
    %321 = vsyncpa [#allocation3], 1
    %s322 = scalar_lea.sflag [#allocation3], 1
    %323 = vsyncpa %s322, 1
    %324 = vsyncpa [#allocation4], 1
    %s325 = scalar_lea.sflag [#allocation4], 1
    %326 = vsyncpa %s325, 1

</llo_original>
